<compile_context>
chip_gen: v7x
topology: tpu7x:2x2x1
jax: 0.10.0
libtpu: 0.0.40
codegen_flags: <defaults>
</compile_context>

<pallas_src>
import math

import jax
import jax.numpy as jnp
import numpy as np
from jax.experimental import pallas as pl
from jax.experimental.pallas import tpu as pltpu


def season_block_kernel(x_ref, wc_ref, bc_ref, out_ref):
    # x_ref  : (C, T)   lane-dense input tile
    # wc_ref : (O, C)   fused weight  (poly^T @ conv_weight)
    # bc_ref : (O, 1)   fused bias    (poly^T @ conv_bias), broadcasts over lanes
    # out_ref: (O, T)
    out = jnp.dot(wc_ref[...], x_ref[...], preferred_element_type=jnp.float32)
    out_ref[...] = (out + bc_ref[...]).astype(out_ref.dtype)


def _choose_lane_tile(N):
    """Lane tile for the batch-folded path.

    Large enough to amortize the ~0.35us per-step overhead, kept to >=2 grid
    steps when there is enough work (v7x megacore sharding), capped at 8192
    lanes (double-buffered working set << v5e's 16 MiB scoped VMEM default).
    """
    if N <= 1024:
        return ((N + 127) // 128) * 128          # single step, lane-aligned
    nt = min(8192, (N // (2 * 512)) * 512)       # multiple of 512, >=2 steps
    return max(nt, 512)


def _season_native(x, wc, bc, B, C, H, O, tH):
    """H is a multiple of 128: read (B,C,H) and write (B,O,H) natively."""
    grid_spec = pltpu.PrefetchScalarGridSpec(
        num_scalar_prefetch=0,
        grid=(B, H // tH),
        in_specs=[
            pl.BlockSpec((None, C, tH), lambda b, h: (b, 0, h)),  # input tile
            pl.BlockSpec((O, C), lambda b, h: (0, 0)),            # resident weights
            pl.BlockSpec((O, 1), lambda b, h: (0, 0)),
        ],
        out_specs=pl.BlockSpec((None, O, tH), lambda b, h: (b, 0, h)),
    )
    return pl.pallas_call(
        season_block_kernel,
        out_shape=jax.ShapeDtypeStruct((B, O, H), jnp.float32),
        grid_spec=grid_spec,
        compiler_params=pltpu.CompilerParams(
            dimension_semantics=("parallel", "parallel"),
            vmem_limit_bytes=32 << 20),
    )(x, wc, bc)


def _season_folded(x, wc, bc, B, C, H, O):
    """Small / ragged H: fold batch into the lane dimension (lane-dense slab)."""
    N = B * H
    x2 = jnp.transpose(x, (1, 0, 2)).reshape(C, N)   # (C, B*H)

    nt = _choose_lane_tile(N)
    n_pad = pl.cdiv(N, nt) * nt
    if n_pad != N:
        x2 = jnp.pad(x2, ((0, 0), (0, n_pad - N)))

    grid_spec = pltpu.PrefetchScalarGridSpec(
        num_scalar_prefetch=0,
        grid=(n_pad // nt,),
        in_specs=[
            pl.BlockSpec((C, nt), lambda n: (0, n)),   # input slab tile
            pl.BlockSpec((O, C), lambda n: (0, 0)),    # constant index maps:
            pl.BlockSpec((O, 1), lambda n: (0, 0)),    #   weights stay resident
        ],
        out_specs=pl.BlockSpec((O, nt), lambda n: (0, n)),
    )
    out = pl.pallas_call(
        season_block_kernel,
        out_shape=jax.ShapeDtypeStruct((O, n_pad), jnp.float32),
        grid_spec=grid_spec,
        compiler_params=pltpu.CompilerParams(
            dimension_semantics=("parallel",),
            vmem_limit_bytes=32 << 20),
    )(x2, wc, bc)

    # padded lanes carry only the broadcast bias -> sliced off; then
    # (O, B*H) -> (B, O, H).  jit fuses these layout ops with the kernel call.
    return jnp.transpose(out[:, :N].reshape(O, B, H), (1, 0, 2))


@jax.jit
def season_block(x, w, b, poly):
    """x: (B, in_dim, H); w: (P, in_dim, 1); b: (P,); poly: (P, out_dim).

    Returns (B, out_dim, H), matching SeasonBlock.forward.
    """
    B, C, H = x.shape
    P, O = poly.shape

    x = x.astype(jnp.float32)
    # Fuse the two matmuls on the (tiny, static) parameter side:
    #   out = poly^T @ (W x + b) = (poly^T W) x + (poly^T b)
    pt = jnp.transpose(poly).astype(jnp.float32)          # (O, P)
    wc = pt @ w.reshape(P, C).astype(jnp.float32)         # (O, C)
    bc = pt @ b.reshape(P, 1).astype(jnp.float32)         # (O, 1)

    if H >= 128 and H % 128 == 0:
        tH = 512 if H % 512 == 0 else (256 if H % 256 == 0 else 128)
        return _season_native(x, wc, bc, B, C, H, O, tH)
    return _season_folded(x, wc, bc, B, C, H, O)


def season_block_ref(x, w, b, poly):
    """Plain-JAX reference mirroring SeasonBlock.forward exactly."""
    y = jnp.einsum('bch,pc->bph', x, w[:, :, 0]) + b[None, :, None]
    return jnp.einsum('bph,po->boh', y, poly)


def make_poly_space(out_dim, factor=1):
    """poly_space exactly as in SeasonBlock.__init__."""
    season_poly = factor * min(32, int(out_dim // 2))
    fourier_space = jnp.arange(0, out_dim, dtype=jnp.float32) / out_dim
    if season_poly % 2 == 0:
        p1, p2 = season_poly // 2, season_poly // 2
    else:
        p1, p2 = season_poly // 2, season_poly // 2 + 1
    s1 = jnp.stack([jnp.cos(2.0 * math.pi * p * fourier_space)
                    for p in range(1, p1 + 1)], axis=0)
    s2 = jnp.stack([jnp.sin(2.0 * math.pi * p * fourier_space)
                    for p in range(1, p2 + 1)], axis=0)
    return jnp.concatenate([s1, s2], axis=0), season_poly   # (season_poly, out_dim)


if __name__ == "__main__":
    key = jax.random.PRNGKey(0)

    def run_case(B, in_dim, H, out_dim, key):
        poly, P = make_poly_space(out_dim, factor=1)
        k1, k2, k3 = jax.random.split(key, 3)
        x = jax.random.normal(k1, (B, in_dim, H), jnp.float32)
        w = 0.1 * jax.random.normal(k2, (P, in_dim, 1), jnp.float32)
        b = 0.1 * jax.random.normal(k3, (P,), jnp.float32)
        out = jax.block_until_ready(season_block(x, w, b, poly))
        ref = season_block_ref(x, w, b, poly)
        np.testing.assert_allclose(np.asarray(out), np.asarray(ref),
                                   rtol=1e-4, atol=1e-4)

    k_a, k_b, k_c = jax.random.split(key, 3)
    # Small case (batch-folded path, single lane-padded step).
    run_case(B=2, in_dim=4, H=16, out_dim=16, key=k_a)
    # Larger N exercising the multi-step batch-folded grid (N = 3072 -> 2 x 1536).
    run_case(B=64, in_dim=4, H=48, out_dim=16, key=k_b)
    # H multiple of 128 -> native (no-transpose) layout path.
    run_case(B=3, in_dim=4, H=256, out_dim=24, key=k_c)

    print("KERNEL_OK")
</pallas_src>

<mosaic_0001>
module attributes {stable_mosaic.version = 11 : i64} {
  func.func @season_block_kernel(%arg0: i32, %arg1: memref<4x128xf32, #tpu.memory_space<vmem>>, %arg2: memref<16x4xf32, #tpu.memory_space<vmem>>, %arg3: memref<16x1xf32, #tpu.memory_space<vmem>>, %arg4: memref<16x128xf32, #tpu.memory_space<vmem>>) attributes {dimension_semantics = [#tpu.dimension_semantics<parallel>], iteration_bounds = array<i64: 1>, scalar_prefetch = 0 : i64, scratch_operands = 0 : i64, tpu.core_type = #tpu.core_type<tc>, window_params = [{transform_indices = @transform_0, window_bounds = array<i64: 4, 128>}, {pipeline_mode = #tpu.pipeline_mode<synchronous>, transform_indices = @transform_1, window_bounds = array<i64: 16, 4>}, {pipeline_mode = #tpu.pipeline_mode<synchronous>, transform_indices = @transform_2, window_bounds = array<i64: 16, 1>}, {transform_indices = @transform_3, window_bounds = array<i64: 16, 128>}]} {
    %c0 = arith.constant 0 : index
    %c0_0 = arith.constant 0 : index
    %0 = vector.load %arg2[%c0, %c0_0] : memref<16x4xf32, #tpu.memory_space<vmem>>, vector<16x4xf32>
    %c0_1 = arith.constant 0 : index
    %c0_2 = arith.constant 0 : index
    %1 = vector.load %arg1[%c0_1, %c0_2] : memref<4x128xf32, #tpu.memory_space<vmem>>, vector<4x128xf32>
    %cst = arith.constant dense<0.000000e+00> : vector<16x128xf32>
    %2 = tpu.matmul %0, %1, %cst {dimension_numbers = #tpu.dot_dimension_numbers<[1], [0], [0], [1], [0, 0, 1, 1], [], []>} : vector<16x4xf32>, vector<4x128xf32>, vector<16x128xf32> -> vector<16x128xf32>
    %c0_3 = arith.constant 0 : index
    %c0_4 = arith.constant 0 : index
    %3 = vector.load %arg3[%c0_3, %c0_4] : memref<16x1xf32, #tpu.memory_space<vmem>>, vector<16x1xf32>
    %4 = vector.broadcast %3 : vector<16x1xf32> to vector<16x128xf32>
    %5 = arith.addf %2, %4 : vector<16x128xf32>
    %c0_5 = arith.constant 0 : index
    %c0_6 = arith.constant 0 : index
    %6 = vector.load %arg4[%c0_5, %c0_6] : memref<16x128xf32, #tpu.memory_space<vmem>>, vector<16x128xf32>
    tpu.vector_store %arg4[%c0_5, %c0_6], %5 {strides = array<i32>} : memref<16x128xf32, #tpu.memory_space<vmem>>, vector<16x128xf32>,
    return
  }
  func.func @transform_0(%arg0: i32) -> (i32, i32) {
    %c0_i32 = arith.constant 0 : i32
    %c0_i32_0 = arith.constant 0 : i32
    return %c0_i32, %arg0 : i32, i32
  }
  func.func @transform_1(%arg0: i32) -> (i32, i32) {
    %c0_i32 = arith.constant 0 : i32
    %c0_i32_0 = arith.constant 0 : i32
    %c0_i32_1 = arith.constant 0 : i32
    return %c0_i32, %c0_i32_0 : i32, i32
  }
  func.func @transform_2(%arg0: i32) -> (i32, i32) {
    %c0_i32 = arith.constant 0 : i32
    %c0_i32_0 = arith.constant 0 : i32
    %c0_i32_1 = arith.constant 0 : i32
    return %c0_i32, %c0_i32_0 : i32, i32
  }
  func.func @transform_3(%arg0: i32) -> (i32, i32) {
    %c0_i32 = arith.constant 0 : i32
    %c0_i32_0 = arith.constant 0 : i32
    return %c0_i32, %arg0 : i32, i32
  }
}

</mosaic_0001>

<llo_original>
// kernel: season_block.1
$region0: #{season_block.1}
  #allocation0 [shape = 'u32[]', space=smem, size = 0x4, offset = 0x4, fixed_abs, tag = 'smem constant byte address 0x4 - core index']
  #allocation1 [shape = 'u32[144,128]{1,0:T(1,128)}', space=vmem, size = 0x12000, scoped, tag = 'internal scratch']
  %s0 = inlined_call_operand.vmem [shape: f32[4,128], index: 0, kind: input, shape index: {}]
  %s1 = inlined_call_operand.vmem [shape: f32[16,4], index: 1, kind: input, shape index: {}]
  %s2 = inlined_call_operand.vmem [shape: f32[16,1], index: 2, kind: input, shape index: {}]
  %s3 = inlined_call_operand.vmem [shape: f32[16,128], index: 3, kind: output, shape index: {}]
  %s4 = sld [smem:[#allocation0]]
  $region22: #{season_block.1} parent=0
    _
  %s6 = ssub.s32 1, %s4
  %s7 = scalar_select 0, %s6, %s4
  // Predicated region
  $region2: #{season_block.1} parent=0 // pred_check
    _
  $region3: #{season_block.1} parent=0 // pred_check_branch
    %9 = sbr.rel (0) target = $region5
  $region4: #{season_block.1} parent=0 // pred_region
    _
  $region5: #{season_block.1} parent=0 // pred_fallthru
    _
  // Predicated region
  $region6: #{season_block.1} parent=0 // pred_check
    _
  $region7: #{season_block.1} parent=0 // pred_check_branch
    %11 = sbr.rel (0) target = $region9
  $region8: #{season_block.1} parent=0 // pred_region
    _
  $region9: #{season_block.1} parent=0 // pred_fallthru
    _
  // Predicated region
  $region10: #{season_block.1} parent=0 // pred_check
    _
  $region11: #{season_block.1} parent=0 // pred_check_branch
    %13 = sbr.rel (0) target = $region13
  $region12: #{season_block.1} parent=0 // pred_region
    _
  $region13: #{season_block.1} parent=0 // pred_fallthru
    _
  %v14 = vld [vmem:[%s1] sm:$0xff]
  %v15 = vld [vmem:[%s1 + $0x8] sm:$0xff]
  %v16 = vld [vmem:[%s0] sm:$0xf]
  %v17 = vld [vmem:[%s2] sm:$0xff]
  %v18 = vld [vmem:[%s2 + $0x8] sm:$0xff]
  %20 = vset.pattern.permute.xlu0 0
  %21 = vperm.xlu0 %20, %v17
  %v22 = vpop.permute.xlu0 %21
  %25 = vset.pattern.permute.xlu0 0
  %26 = vperm.xlu0 %25, %v18
  %v27 = vpop.permute.xlu0 %26
  %vm29 = vcmask 31744
  %v31 = vsel %vm29, %v14, 0
  %v34 = vsel %vm29, %v15, 0
  %vm36 = vcmask 1043456
  %v38 = vsel %vm36, %v16, 0
  %40 = vmatprep.subr.mxu0 0.0
  %41 = vmatpush1.msra.mxu0 %v38
  %42 = vmatprep.subr.mxu0 0.0
  %43 = vmatpush1.msra.mxu0 0.0
  %44 = vmatprep.subr.mxu0 0.0
  %45 = vmatpush1.msra.mxu0 0.0
  %46 = vmatprep.subr.mxu0 0.0
  %47 = vmatpush1.msra.mxu0 0.0
  %48 = vmatprep.subr.mxu0 0.0
  %49 = vmatpush1.msra.mxu0 0.0
  %50 = vmatprep.subr.mxu0 0.0
  %51 = vmatpush1.msra.mxu0 0.0
  %52 = vmatprep.subr.mxu0 0.0
  %53 = vmatpush1.msra.mxu0 0.0
  %54 = vmatprep.subr.mxu0 0.0
  %55 = vmatpush1.msra.mxu0 0.0
  %56 = vmatprep.subr.mxu0 0.0
  %57 = vmatpush1.msra.mxu0 0.0
  %58 = vmatprep.subr.mxu0 0.0
  %59 = vmatpush1.msra.mxu0 0.0
  %60 = vmatprep.subr.mxu0 0.0
  %61 = vmatpush1.msra.mxu0 0.0
  %62 = vmatprep.subr.mxu0 0.0
  %63 = vmatpush1.msra.mxu0 0.0
  %64 = vmatprep.subr.mxu0 0.0
  %65 = vmatpush1.msra.mxu0 0.0
  %66 = vmatprep.subr.mxu0 0.0
  %67 = vmatpush1.msra.mxu0 0.0
  %68 = vmatprep.subr.mxu0 0.0
  %69 = vmatpush1.msra.mxu0 0.0
  %70 = vmatprep.subr.mxu0 0.0
  %71 = vmatpush1.msra.mxu0 0.0
  %72 = vmatprep.subr.mxu0 0.0
  %73 = vmatpush1.msra.mxu0 0.0
  %74 = vmatprep.subr.mxu0 0.0
  %75 = vmatpush1.msra.mxu0 0.0
  %76 = vmatprep.subr.mxu0 0.0
  %77 = vmatpush1.msra.mxu0 0.0
  %78 = vmatprep.subr.mxu0 0.0
  %79 = vmatpush1.msra.mxu0 0.0
  %80 = vmatprep.subr.mxu0 0.0
  %81 = vmatpush1.msra.mxu0 0.0
  %82 = vmatprep.subr.mxu0 0.0
  %83 = vmatpush1.msra.mxu0 0.0
  %84 = vmatprep.subr.mxu0 0.0
  %85 = vmatpush1.msra.mxu0 0.0
  %86 = vmatprep.subr.mxu0 0.0
  %87 = vmatpush1.msra.mxu0 0.0
  %88 = vmatprep.subr.mxu0 0.0
  %89 = vmatpush1.msra.mxu0 0.0
  %90 = vmatprep.subr.mxu0 0.0
  %91 = vmatpush1.msra.mxu0 0.0
  %92 = vmatprep.subr.mxu0 0.0
  %93 = vmatpush1.msra.mxu0 0.0
  %94 = vmatprep.subr.mxu0 0.0
  %95 = vmatpush1.msra.mxu0 0.0
  %96 = vmatprep.subr.mxu0 0.0
  %97 = vmatpush1.msra.mxu0 0.0
  %98 = vmatprep.subr.mxu0 0.0
  %99 = vmatpush1.msra.mxu0 0.0
  %100 = vmatprep.subr.mxu0 0.0
  %101 = vmatpush1.msra.mxu0 0.0
  %102 = vmatprep.subr.mxu0 0.0
  %103 = vmatpush1.msra.mxu0 0.0
  %104 = vmatprep.mubr.f32.mxu0 0.0
  %105 = vmatmul.mubr.f32.gmra.mrb[0].mxu0 %v31
  %v106 = vpop.f32.mrb[0].mxu0
  %v107 = vadd.f32 %v22, %v106
  %v108 = vpop.f32.mrb[0].mxu0
  %109 = vmatprep.mubr.f32.mxu0 0.0
  %110 = vmatmul.mubr.f32.gmra.mrb[0].mxu0 %v34
  %v111 = vpop.f32.mrb[0].mxu0
  %v112 = vadd.f32 %v27, %v111
  %v113 = vpop.f32.mrb[0].mxu0
  %114 = vdwg.mxu0
  %115 = vst [vmem:[%s3] sm:$0xff] %v107
  %116 = vst [vmem:[%s3 + $0x8] sm:$0xff] %v112
  // Predicated region
  $region14: #{season_block.1} parent=0 // pred_check
    _
  $region15: #{season_block.1} parent=0 // pred_check_branch
    %118 = sbr.rel (0) target = $region17
  $region16: #{season_block.1} parent=0 // pred_region
    _
  $region17: #{season_block.1} parent=0 // pred_fallthru
    _
  // Predicated region
  $region18: #{season_block.1} parent=0 // pred_check
    _
  $region19: #{season_block.1} parent=0 // pred_check_branch
    %120 = sbr.rel (0) target = $region21
  $region20: #{season_block.1} parent=0 // pred_region
    _
  $region21: #{season_block.1} parent=0 // pred_fallthru
    _

</llo_original>
